<compile_context>
chip_gen: v5e
topology: v5e:2x2
jax: 0.10.0
libtpu: 0.0.40
codegen_flags: <defaults>
</compile_context>

<pallas_src>
import functools

import jax
import jax.numpy as jnp
from jax import lax
from jax.experimental import pallas as pl
from jax.experimental.pallas import tpu as pltpu  # noqa: F401  (TPU backend / kept for explicitness)


# ----------------------------- Fused kernel ---------------------------------

def _lstm_basic_kernel(seq_ref, emb_ref, wih_ref, whh_ref, b_ref, lw_ref, lb_ref,
                       prob_ref, hn_ref, cn_ref, *, S, B, H):
    item_num = emb_ref.shape[0]
    SB = S * B
    H4 = 4 * H

    # ---- Embedding gather as one-hot matmul (MXU), x_flat: (S*B, H) ----
    seq = seq_ref[...]                                               # (S*B, 1) int32
    item_iota = lax.broadcasted_iota(jnp.int32, (SB, item_num), 1)
    one_hot = (item_iota == seq).astype(jnp.float32)                 # (S*B, item_num)
    x_flat = jnp.dot(one_hot, emb_ref[...],
                     preferred_element_type=jnp.float32)             # (S*B, H)

    # ---- Hoisted input projection + fused bias for all time steps ----
    xw = (jnp.dot(x_flat, wih_ref[...],
                  preferred_element_type=jnp.float32)
          + b_ref[...])                                              # (S*B, 4H)

    whh = whh_ref[...]                                               # (H, 4H)

    # Lane mask: g-gate block (lanes [2H, 3H)) gets tanh, i/f/o get sigmoid.
    lane = lax.broadcasted_iota(jnp.int32, (B, H4), 1)
    g_mask = (lane >= 2 * H) & (lane < 3 * H)

    h = jnp.zeros((B, H), jnp.float32)
    c = jnp.zeros((B, H), jnp.float32)
    hs = []
    for t in range(S):                                               # fully unrolled (S static)
        gates = xw[t * B:(t + 1) * B, :] + jnp.dot(
            h, whh, preferred_element_type=jnp.float32)              # (B, 4H)
        act = jnp.where(g_mask, jnp.tanh(gates), jax.nn.sigmoid(gates))
        i_g = act[:, 0 * H:1 * H]
        f_g = act[:, 1 * H:2 * H]
        g_g = act[:, 2 * H:3 * H]
        o_g = act[:, 3 * H:4 * H]
        c = f_g * c + i_g * g_g
        h = o_g * jnp.tanh(c)
        hs.append(h)

    # Final LSTM state: written exactly once.
    hn_ref[...] = h
    cn_ref[...] = c

    # ---- Fused linear head over all time steps at once ----
    h_all = jnp.concatenate(hs, axis=0)                              # (S*B, H), row = t*B + b
    prob_ref[...] = (jnp.dot(h_all, lw_ref[...],
                             preferred_element_type=jnp.float32)
                     + lb_ref[...])


# ----------------------------- Module wrapper --------------------------------

@jax.jit
def lstm_basic_forward(params, seq_idx):
    """Mirrors LSTM_Basic.forward: returns (prob, (h_n, c_n))."""
    S, B = seq_idx.shape
    item_num, H = params["item_emb"].shape

    seq_col = seq_idx.reshape(S * B, 1).astype(jnp.int32)            # (S*B, 1)
    wih_t = params["w_ih"].T                                         # (H, 4H)
    whh_t = params["w_hh"].T                                         # (H, 4H)
    bias = (params["b_ih"] + params["b_hh"]).reshape(1, 4 * H)       # (1, 4H)
    lw_t = params["lin_w"].T                                         # (H, item_num)
    lb = params["lin_b"].reshape(1, item_num)                        # (1, item_num)

    kernel = functools.partial(_lstm_basic_kernel, S=S, B=B, H=H)
    prob, h_n, c_n = pl.pallas_call(
        kernel,
        out_shape=(
            jax.ShapeDtypeStruct((S * B, item_num), jnp.float32),
            jax.ShapeDtypeStruct((B, H), jnp.float32),
            jax.ShapeDtypeStruct((B, H), jnp.float32),
        ),
    )(seq_col, params["item_emb"], wih_t, whh_t, bias, lw_t, lb)

    # PyTorch state shape: (num_layers=1, B, H)
    return prob, (h_n[None], c_n[None])


# ----------------------------- Reference (pure JAX) --------------------------

def lstm_basic_reference(params, seq_idx):
    x = jnp.take(params["item_emb"], seq_idx, axis=0)
    H = params["item_emb"].shape[1]
    S, B = seq_idx.shape

    def step(carry, x_t):
        h, c = carry
        gates = (x_t @ params["w_ih"].T + params["b_ih"]
                 + h @ params["w_hh"].T + params["b_hh"])
        i = jax.nn.sigmoid(gates[:, 0 * H:1 * H])
        f = jax.nn.sigmoid(gates[:, 1 * H:2 * H])
        g = jnp.tanh(gates[:, 2 * H:3 * H])
        o = jax.nn.sigmoid(gates[:, 3 * H:4 * H])
        c_new = f * c + i * g
        h_new = o * jnp.tanh(c_new)
        return (h_new, c_new), h_new

    h0 = jnp.zeros((B, H), jnp.float32)
    c0 = jnp.zeros((B, H), jnp.float32)
    (h_n, c_n), outs = jax.lax.scan(step, (h0, c0), x)
    out_flat = outs.reshape(S * B, H)
    prob = out_flat @ params["lin_w"].T + params["lin_b"]
    return prob, (h_n[None], c_n[None])


# ----------------------------- Main -----------------------------------------

if __name__ == "__main__":
    IN_CHANNEL = 32      # hidden size / embedding dim
    ITEM_NUM = 64
    SEQ_LEN = 8
    BATCH = 4

    key = jax.random.PRNGKey(0)
    ks = jax.random.split(key, 8)
    stdv = 1.0 / jnp.sqrt(IN_CHANNEL)

    params = {
        "item_emb": jax.random.uniform(ks[0], (ITEM_NUM, IN_CHANNEL),
                                       jnp.float32, -0.1, 0.1),
        # nn.LSTM(in_channel, in_channel, 1) params (PyTorch gate order i,f,g,o)
        "w_ih": jax.random.uniform(ks[1], (4 * IN_CHANNEL, IN_CHANNEL),
                                   jnp.float32, -stdv, stdv),
        "w_hh": jax.random.uniform(ks[2], (4 * IN_CHANNEL, IN_CHANNEL),
                                   jnp.float32, -stdv, stdv),
        "b_ih": jax.random.uniform(ks[3], (4 * IN_CHANNEL,),
                                   jnp.float32, -stdv, stdv),
        "b_hh": jax.random.uniform(ks[4], (4 * IN_CHANNEL,),
                                   jnp.float32, -stdv, stdv),
        # nn.Linear(in_channel, item_num)
        "lin_w": jax.random.uniform(ks[5], (ITEM_NUM, IN_CHANNEL),
                                    jnp.float32, -stdv, stdv),
        "lin_b": jax.random.uniform(ks[6], (ITEM_NUM,),
                                    jnp.float32, -stdv, stdv),
    }

    seq_idx = jax.random.randint(ks[7], (SEQ_LEN, BATCH), 0, ITEM_NUM,
                                 dtype=jnp.int32)

    prob, (h_n, c_n) = lstm_basic_forward(params, seq_idx)
    jax.block_until_ready((prob, h_n, c_n))

    # correctness check against pure-JAX reference
    prob_ref, (h_ref, c_ref) = lstm_basic_reference(params, seq_idx)
    assert prob.shape == (SEQ_LEN * BATCH, ITEM_NUM)
    assert h_n.shape == (1, BATCH, IN_CHANNEL)
    assert c_n.shape == (1, BATCH, IN_CHANNEL)
    assert jnp.allclose(prob, prob_ref, atol=1e-3, rtol=1e-3)
    assert jnp.allclose(h_n, h_ref, atol=1e-3, rtol=1e-3)
    assert jnp.allclose(c_n, c_ref, atol=1e-3, rtol=1e-3)

    print("KERNEL_OK")
</pallas_src>

<mosaic_0001>
module attributes {stable_mosaic.version = 11 : i64} {
  func.func @_lstm_basic_kernel(%arg0: memref<32x1xi32, #tpu.memory_space<vmem>>, %arg1: memref<64x32xf32, #tpu.memory_space<vmem>>, %arg2: memref<32x128xf32, #tpu.memory_space<vmem>>, %arg3: memref<32x128xf32, #tpu.memory_space<vmem>>, %arg4: memref<1x128xf32, #tpu.memory_space<vmem>>, %arg5: memref<32x64xf32, #tpu.memory_space<vmem>>, %arg6: memref<1x64xf32, #tpu.memory_space<vmem>>, %arg7: memref<32x64xf32, #tpu.memory_space<vmem>>, %arg8: memref<4x32xf32, #tpu.memory_space<vmem>>, %arg9: memref<4x32xf32, #tpu.memory_space<vmem>>) attributes {dimension_semantics = [], scalar_prefetch = 0 : i64, scratch_operands = 0 : i64, tpu.core_type = #tpu.core_type<tc>} {
    %c0 = arith.constant 0 : index
    %c0_0 = arith.constant 0 : index
    %0 = vector.load %arg0[%c0, %c0_0] : memref<32x1xi32, #tpu.memory_space<vmem>>, vector<32x1xi32>
    %1 = tpu.iota {dimensions = array<i32: 1>} : vector<32x64xi32>
    %2 = vector.broadcast %0 : vector<32x1xi32> to vector<32x64xi32>
    %3 = arith.cmpi eq, %1, %2 : vector<32x64xi32>
    %4 = arith.extui %3 : vector<32x64xi1> to vector<32x64xi32>
    %5 = arith.sitofp %4 : vector<32x64xi32> to vector<32x64xf32>
    %c0_1 = arith.constant 0 : index
    %c0_2 = arith.constant 0 : index
    %6 = vector.load %arg1[%c0_1, %c0_2] : memref<64x32xf32, #tpu.memory_space<vmem>>, vector<64x32xf32>
    %cst = arith.constant dense<0.000000e+00> : vector<32x32xf32>
    %7 = tpu.matmul %5, %6, %cst {dimension_numbers = #tpu.dot_dimension_numbers<[1], [0], [0], [1], [0, 0, 1, 1], [], []>} : vector<32x64xf32>, vector<64x32xf32>, vector<32x32xf32> -> vector<32x32xf32>
    %c0_3 = arith.constant 0 : index
    %c0_4 = arith.constant 0 : index
    %8 = vector.load %arg2[%c0_3, %c0_4] : memref<32x128xf32, #tpu.memory_space<vmem>>, vector<32x128xf32>
    %cst_5 = arith.constant dense<0.000000e+00> : vector<32x128xf32>
    %9 = tpu.matmul %7, %8, %cst_5 {dimension_numbers = #tpu.dot_dimension_numbers<[1], [0], [0], [1], [0, 0, 1, 1], [], []>} : vector<32x32xf32>, vector<32x128xf32>, vector<32x128xf32> -> vector<32x128xf32>
    %c0_6 = arith.constant 0 : index
    %c0_7 = arith.constant 0 : index
    %10 = vector.load %arg4[%c0_6, %c0_7] : memref<1x128xf32, #tpu.memory_space<vmem>>, vector<1x128xf32>
    %11 = vector.broadcast %10 : vector<1x128xf32> to vector<32x128xf32>
    %12 = arith.addf %9, %11 : vector<32x128xf32>
    %c0_8 = arith.constant 0 : index
    %c0_9 = arith.constant 0 : index
    %13 = vector.load %arg3[%c0_8, %c0_9] : memref<32x128xf32, #tpu.memory_space<vmem>>, vector<32x128xf32>
    %14 = tpu.iota {dimensions = array<i32: 1>} : vector<4x128xi32>
    %c64_i32 = arith.constant 64 : i32
    %15 = vector.broadcast %c64_i32 : i32 to vector<4x128xi32>
    %16 = arith.cmpi sge, %14, %15 : vector<4x128xi32>
    %c96_i32 = arith.constant 96 : i32
    %17 = vector.broadcast %c96_i32 : i32 to vector<4x128xi32>
    %18 = arith.cmpi slt, %14, %17 : vector<4x128xi32>
    %19 = arith.andi %16, %18 : vector<4x128xi1>
    %cst_10 = arith.constant 0.000000e+00 : f32
    %20 = vector.broadcast %cst_10 : f32 to vector<4x32xf32>
    %cst_11 = arith.constant 0.000000e+00 : f32
    %21 = vector.broadcast %cst_11 : f32 to vector<4x32xf32>
    %22 = vector.extract_strided_slice %12 {offsets = [0, 0], sizes = [4, 128], strides = [1, 1]} : vector<32x128xf32> to vector<4x128xf32>
    %cst_12 = arith.constant dense<0.000000e+00> : vector<4x128xf32>
    %23 = tpu.matmul %20, %13, %cst_12 {dimension_numbers = #tpu.dot_dimension_numbers<[1], [0], [0], [1], [0, 0, 1, 1], [], []>} : vector<4x32xf32>, vector<32x128xf32>, vector<4x128xf32> -> vector<4x128xf32>
    %24 = arith.addf %22, %23 : vector<4x128xf32>
    %25 = math.tanh %24 : vector<4x128xf32>
    %26 = arith.negf %24 : vector<4x128xf32>
    %27 = math.exp %26 : vector<4x128xf32>
    %cst_13 = arith.constant 1.000000e+00 : f32
    %28 = vector.broadcast %cst_13 : f32 to vector<4x128xf32>
    %29 = arith.addf %28, %27 : vector<4x128xf32>
    %30 = arith.divf %28, %29 : vector<4x128xf32>
    %31 = arith.select %19, %25, %30 : vector<4x128xi1>, vector<4x128xf32>
    %32 = vector.extract_strided_slice %31 {offsets = [0, 0], sizes = [4, 32], strides = [1, 1]} : vector<4x128xf32> to vector<4x32xf32>
    %33 = vector.extract_strided_slice %31 {offsets = [0, 32], sizes = [4, 32], strides = [1, 1]} : vector<4x128xf32> to vector<4x32xf32>
    %34 = vector.extract_strided_slice %31 {offsets = [0, 64], sizes = [4, 32], strides = [1, 1]} : vector<4x128xf32> to vector<4x32xf32>
    %35 = vector.extract_strided_slice %31 {offsets = [0, 96], sizes = [4, 32], strides = [1, 1]} : vector<4x128xf32> to vector<4x32xf32>
    %36 = arith.mulf %33, %21 : vector<4x32xf32>
    %37 = arith.mulf %32, %34 : vector<4x32xf32>
    %38 = arith.addf %36, %37 : vector<4x32xf32>
    %39 = math.tanh %38 : vector<4x32xf32>
    %40 = arith.mulf %35, %39 : vector<4x32xf32>
    %41 = vector.extract_strided_slice %12 {offsets = [4, 0], sizes = [4, 128], strides = [1, 1]} : vector<32x128xf32> to vector<4x128xf32>
    %cst_14 = arith.constant dense<0.000000e+00> : vector<4x128xf32>
    %42 = tpu.matmul %40, %13, %cst_14 {dimension_numbers = #tpu.dot_dimension_numbers<[1], [0], [0], [1], [0, 0, 1, 1], [], []>} : vector<4x32xf32>, vector<32x128xf32>, vector<4x128xf32> -> vector<4x128xf32>
    %43 = arith.addf %41, %42 : vector<4x128xf32>
    %44 = math.tanh %43 : vector<4x128xf32>
    %45 = arith.negf %43 : vector<4x128xf32>
    %46 = math.exp %45 : vector<4x128xf32>
    %cst_15 = arith.constant 1.000000e+00 : f32
    %47 = vector.broadcast %cst_15 : f32 to vector<4x128xf32>
    %48 = arith.addf %47, %46 : vector<4x128xf32>
    %49 = arith.divf %47, %48 : vector<4x128xf32>
    %50 = arith.select %19, %44, %49 : vector<4x128xi1>, vector<4x128xf32>
    %51 = vector.extract_strided_slice %50 {offsets = [0, 0], sizes = [4, 32], strides = [1, 1]} : vector<4x128xf32> to vector<4x32xf32>
    %52 = vector.extract_strided_slice %50 {offsets = [0, 32], sizes = [4, 32], strides = [1, 1]} : vector<4x128xf32> to vector<4x32xf32>
    %53 = vector.extract_strided_slice %50 {offsets = [0, 64], sizes = [4, 32], strides = [1, 1]} : vector<4x128xf32> to vector<4x32xf32>
    %54 = vector.extract_strided_slice %50 {offsets = [0, 96], sizes = [4, 32], strides = [1, 1]} : vector<4x128xf32> to vector<4x32xf32>
    %55 = arith.mulf %52, %38 : vector<4x32xf32>
    %56 = arith.mulf %51, %53 : vector<4x32xf32>
    %57 = arith.addf %55, %56 : vector<4x32xf32>
    %58 = math.tanh %57 : vector<4x32xf32>
    %59 = arith.mulf %54, %58 : vector<4x32xf32>
    %60 = vector.extract_strided_slice %12 {offsets = [8, 0], sizes = [4, 128], strides = [1, 1]} : vector<32x128xf32> to vector<4x128xf32>
    %cst_16 = arith.constant dense<0.000000e+00> : vector<4x128xf32>
    %61 = tpu.matmul %59, %13, %cst_16 {dimension_numbers = #tpu.dot_dimension_numbers<[1], [0], [0], [1], [0, 0, 1, 1], [], []>} : vector<4x32xf32>, vector<32x128xf32>, vector<4x128xf32> -> vector<4x128xf32>
    %62 = arith.addf %60, %61 : vector<4x128xf32>
    %63 = math.tanh %62 : vector<4x128xf32>
    %64 = arith.negf %62 : vector<4x128xf32>
    %65 = math.exp %64 : vector<4x128xf32>
    %cst_17 = arith.constant 1.000000e+00 : f32
    %66 = vector.broadcast %cst_17 : f32 to vector<4x128xf32>
    %67 = arith.addf %66, %65 : vector<4x128xf32>
    %68 = arith.divf %66, %67 : vector<4x128xf32>
    %69 = arith.select %19, %63, %68 : vector<4x128xi1>, vector<4x128xf32>
    %70 = vector.extract_strided_slice %69 {offsets = [0, 0], sizes = [4, 32], strides = [1, 1]} : vector<4x128xf32> to vector<4x32xf32>
    %71 = vector.extract_strided_slice %69 {offsets = [0, 32], sizes = [4, 32], strides = [1, 1]} : vector<4x128xf32> to vector<4x32xf32>
    %72 = vector.extract_strided_slice %69 {offsets = [0, 64], sizes = [4, 32], strides = [1, 1]} : vector<4x128xf32> to vector<4x32xf32>
    %73 = vector.extract_strided_slice %69 {offsets = [0, 96], sizes = [4, 32], strides = [1, 1]} : vector<4x128xf32> to vector<4x32xf32>
    %74 = arith.mulf %71, %57 : vector<4x32xf32>
    %75 = arith.mulf %70, %72 : vector<4x32xf32>
    %76 = arith.addf %74, %75 : vector<4x32xf32>
    %77 = math.tanh %76 : vector<4x32xf32>
    %78 = arith.mulf %73, %77 : vector<4x32xf32>
    %79 = vector.extract_strided_slice %12 {offsets = [12, 0], sizes = [4, 128], strides = [1, 1]} : vector<32x128xf32> to vector<4x128xf32>
    %cst_18 = arith.constant dense<0.000000e+00> : vector<4x128xf32>
    %80 = tpu.matmul %78, %13, %cst_18 {dimension_numbers = #tpu.dot_dimension_numbers<[1], [0], [0], [1], [0, 0, 1, 1], [], []>} : vector<4x32xf32>, vector<32x128xf32>, vector<4x128xf32> -> vector<4x128xf32>
    %81 = arith.addf %79, %80 : vector<4x128xf32>
    %82 = math.tanh %81 : vector<4x128xf32>
    %83 = arith.negf %81 : vector<4x128xf32>
    %84 = math.exp %83 : vector<4x128xf32>
    %cst_19 = arith.constant 1.000000e+00 : f32
    %85 = vector.broadcast %cst_19 : f32 to vector<4x128xf32>
    %86 = arith.addf %85, %84 : vector<4x128xf32>
    %87 = arith.divf %85, %86 : vector<4x128xf32>
    %88 = arith.select %19, %82, %87 : vector<4x128xi1>, vector<4x128xf32>
    %89 = vector.extract_strided_slice %88 {offsets = [0, 0], sizes = [4, 32], strides = [1, 1]} : vector<4x128xf32> to vector<4x32xf32>
    %90 = vector.extract_strided_slice %88 {offsets = [0, 32], sizes = [4, 32], strides = [1, 1]} : vector<4x128xf32> to vector<4x32xf32>
    %91 = vector.extract_strided_slice %88 {offsets = [0, 64], sizes = [4, 32], strides = [1, 1]} : vector<4x128xf32> to vector<4x32xf32>
    %92 = vector.extract_strided_slice %88 {offsets = [0, 96], sizes = [4, 32], strides = [1, 1]} : vector<4x128xf32> to vector<4x32xf32>
    %93 = arith.mulf %90, %76 : vector<4x32xf32>
    %94 = arith.mulf %89, %91 : vector<4x32xf32>
    %95 = arith.addf %93, %94 : vector<4x32xf32>
    %96 = math.tanh %95 : vector<4x32xf32>
    %97 = arith.mulf %92, %96 : vector<4x32xf32>
    %98 = vector.extract_strided_slice %12 {offsets = [16, 0], sizes = [4, 128], strides = [1, 1]} : vector<32x128xf32> to vector<4x128xf32>
    %cst_20 = arith.constant dense<0.000000e+00> : vector<4x128xf32>
    %99 = tpu.matmul %97, %13, %cst_20 {dimension_numbers = #tpu.dot_dimension_numbers<[1], [0], [0], [1], [0, 0, 1, 1], [], []>} : vector<4x32xf32>, vector<32x128xf32>, vector<4x128xf32> -> vector<4x128xf32>
    %100 = arith.addf %98, %99 : vector<4x128xf32>
    %101 = math.tanh %100 : vector<4x128xf32>
    %102 = arith.negf %100 : vector<4x128xf32>
    %103 = math.exp %102 : vector<4x128xf32>
    %cst_21 = arith.constant 1.000000e+00 : f32
    %104 = vector.broadcast %cst_21 : f32 to vector<4x128xf32>
    %105 = arith.addf %104, %103 : vector<4x128xf32>
    %106 = arith.divf %104, %105 : vector<4x128xf32>
    %107 = arith.select %19, %101, %106 : vector<4x128xi1>, vector<4x128xf32>
    %108 = vector.extract_strided_slice %107 {offsets = [0, 0], sizes = [4, 32], strides = [1, 1]} : vector<4x128xf32> to vector<4x32xf32>
    %109 = vector.extract_strided_slice %107 {offsets = [0, 32], sizes = [4, 32], strides = [1, 1]} : vector<4x128xf32> to vector<4x32xf32>
    %110 = vector.extract_strided_slice %107 {offsets = [0, 64], sizes = [4, 32], strides = [1, 1]} : vector<4x128xf32> to vector<4x32xf32>
    %111 = vector.extract_strided_slice %107 {offsets = [0, 96], sizes = [4, 32], strides = [1, 1]} : vector<4x128xf32> to vector<4x32xf32>
    %112 = arith.mulf %109, %95 : vector<4x32xf32>
    %113 = arith.mulf %108, %110 : vector<4x32xf32>
    %114 = arith.addf %112, %113 : vector<4x32xf32>
    %115 = math.tanh %114 : vector<4x32xf32>
    %116 = arith.mulf %111, %115 : vector<4x32xf32>
    %117 = vector.extract_strided_slice %12 {offsets = [20, 0], sizes = [4, 128], strides = [1, 1]} : vector<32x128xf32> to vector<4x128xf32>
    %cst_22 = arith.constant dense<0.000000e+00> : vector<4x128xf32>
    %118 = tpu.matmul %116, %13, %cst_22 {dimension_numbers = #tpu.dot_dimension_numbers<[1], [0], [0], [1], [0, 0, 1, 1], [], []>} : vector<4x32xf32>, vector<32x128xf32>, vector<4x128xf32> -> vector<4x128xf32>
    %119 = arith.addf %117, %118 : vector<4x128xf32>
    %120 = math.tanh %119 : vector<4x128xf32>
    %121 = arith.negf %119 : vector<4x128xf32>
    %122 = math.exp %121 : vector<4x128xf32>
    %cst_23 = arith.constant 1.000000e+00 : f32
    %123 = vector.broadcast %cst_23 : f32 to vector<4x128xf32>
    %124 = arith.addf %123, %122 : vector<4x128xf32>
    %125 = arith.divf %123, %124 : vector<4x128xf32>
    %126 = arith.select %19, %120, %125 : vector<4x128xi1>, vector<4x128xf32>
    %127 = vector.extract_strided_slice %126 {offsets = [0, 0], sizes = [4, 32], strides = [1, 1]} : vector<4x128xf32> to vector<4x32xf32>
    %128 = vector.extract_strided_slice %126 {offsets = [0, 32], sizes = [4, 32], strides = [1, 1]} : vector<4x128xf32> to vector<4x32xf32>
    %129 = vector.extract_strided_slice %126 {offsets = [0, 64], sizes = [4, 32], strides = [1, 1]} : vector<4x128xf32> to vector<4x32xf32>
    %130 = vector.extract_strided_slice %126 {offsets = [0, 96], sizes = [4, 32], strides = [1, 1]} : vector<4x128xf32> to vector<4x32xf32>
    %131 = arith.mulf %128, %114 : vector<4x32xf32>
    %132 = arith.mulf %127, %129 : vector<4x32xf32>
    %133 = arith.addf %131, %132 : vector<4x32xf32>
    %134 = math.tanh %133 : vector<4x32xf32>
    %135 = arith.mulf %130, %134 : vector<4x32xf32>
    %136 = vector.extract_strided_slice %12 {offsets = [24, 0], sizes = [4, 128], strides = [1, 1]} : vector<32x128xf32> to vector<4x128xf32>
    %cst_24 = arith.constant dense<0.000000e+00> : vector<4x128xf32>
    %137 = tpu.matmul %135, %13, %cst_24 {dimension_numbers = #tpu.dot_dimension_numbers<[1], [0], [0], [1], [0, 0, 1, 1], [], []>} : vector<4x32xf32>, vector<32x128xf32>, vector<4x128xf32> -> vector<4x128xf32>
    %138 = arith.addf %136, %137 : vector<4x128xf32>
    %139 = math.tanh %138 : vector<4x128xf32>
    %140 = arith.negf %138 : vector<4x128xf32>
    %141 = math.exp %140 : vector<4x128xf32>
    %cst_25 = arith.constant 1.000000e+00 : f32
    %142 = vector.broadcast %cst_25 : f32 to vector<4x128xf32>
    %143 = arith.addf %142, %141 : vector<4x128xf32>
    %144 = arith.divf %142, %143 : vector<4x128xf32>
    %145 = arith.select %19, %139, %144 : vector<4x128xi1>, vector<4x128xf32>
    %146 = vector.extract_strided_slice %145 {offsets = [0, 0], sizes = [4, 32], strides = [1, 1]} : vector<4x128xf32> to vector<4x32xf32>
    %147 = vector.extract_strided_slice %145 {offsets = [0, 32], sizes = [4, 32], strides = [1, 1]} : vector<4x128xf32> to vector<4x32xf32>
    %148 = vector.extract_strided_slice %145 {offsets = [0, 64], sizes = [4, 32], strides = [1, 1]} : vector<4x128xf32> to vector<4x32xf32>
    %149 = vector.extract_strided_slice %145 {offsets = [0, 96], sizes = [4, 32], strides = [1, 1]} : vector<4x128xf32> to vector<4x32xf32>
    %150 = arith.mulf %147, %133 : vector<4x32xf32>
    %151 = arith.mulf %146, %148 : vector<4x32xf32>
    %152 = arith.addf %150, %151 : vector<4x32xf32>
    %153 = math.tanh %152 : vector<4x32xf32>
    %154 = arith.mulf %149, %153 : vector<4x32xf32>
    %155 = vector.extract_strided_slice %12 {offsets = [28, 0], sizes = [4, 128], strides = [1, 1]} : vector<32x128xf32> to vector<4x128xf32>
    %cst_26 = arith.constant dense<0.000000e+00> : vector<4x128xf32>
    %156 = tpu.matmul %154, %13, %cst_26 {dimension_numbers = #tpu.dot_dimension_numbers<[1], [0], [0], [1], [0, 0, 1, 1], [], []>} : vector<4x32xf32>, vector<32x128xf32>, vector<4x128xf32> -> vector<4x128xf32>
    %157 = arith.addf %155, %156 : vector<4x128xf32>
    %158 = math.tanh %157 : vector<4x128xf32>
    %159 = arith.negf %157 : vector<4x128xf32>
    %160 = math.exp %159 : vector<4x128xf32>
    %cst_27 = arith.constant 1.000000e+00 : f32
    %161 = vector.broadcast %cst_27 : f32 to vector<4x128xf32>
    %162 = arith.addf %161, %160 : vector<4x128xf32>
    %163 = arith.divf %161, %162 : vector<4x128xf32>
    %164 = arith.select %19, %158, %163 : vector<4x128xi1>, vector<4x128xf32>
    %165 = vector.extract_strided_slice %164 {offsets = [0, 0], sizes = [4, 32], strides = [1, 1]} : vector<4x128xf32> to vector<4x32xf32>
    %166 = vector.extract_strided_slice %164 {offsets = [0, 32], sizes = [4, 32], strides = [1, 1]} : vector<4x128xf32> to vector<4x32xf32>
    %167 = vector.extract_strided_slice %164 {offsets = [0, 64], sizes = [4, 32], strides = [1, 1]} : vector<4x128xf32> to vector<4x32xf32>
    %168 = vector.extract_strided_slice %164 {offsets = [0, 96], sizes = [4, 32], strides = [1, 1]} : vector<4x128xf32> to vector<4x32xf32>
    %169 = arith.mulf %166, %152 : vector<4x32xf32>
    %170 = arith.mulf %165, %167 : vector<4x32xf32>
    %171 = arith.addf %169, %170 : vector<4x32xf32>
    %172 = math.tanh %171 : vector<4x32xf32>
    %173 = arith.mulf %168, %172 : vector<4x32xf32>
    %c0_28 = arith.constant 0 : index
    %c0_29 = arith.constant 0 : index
    %174 = vector.load %arg8[%c0_28, %c0_29] : memref<4x32xf32, #tpu.memory_space<vmem>>, vector<4x32xf32>
    tpu.vector_store %arg8[%c0_28, %c0_29], %173 {strides = array<i32>} : memref<4x32xf32, #tpu.memory_space<vmem>>, vector<4x32xf32>,
    %c0_30 = arith.constant 0 : index
    %c0_31 = arith.constant 0 : index
    %175 = vector.load %arg9[%c0_30, %c0_31] : memref<4x32xf32, #tpu.memory_space<vmem>>, vector<4x32xf32>
    tpu.vector_store %arg9[%c0_30, %c0_31], %171 {strides = array<i32>} : memref<4x32xf32, #tpu.memory_space<vmem>>, vector<4x32xf32>,
    %176 = tpu.concatenate %40, %59, %78, %97, %116, %135, %154, %173 in 0 : vector<4x32xf32>, vector<4x32xf32>, vector<4x32xf32>, vector<4x32xf32>, vector<4x32xf32>, vector<4x32xf32>, vector<4x32xf32>, vector<4x32xf32> -> vector<32x32xf32>
    %c0_32 = arith.constant 0 : index
    %c0_33 = arith.constant 0 : index
    %177 = vector.load %arg5[%c0_32, %c0_33] : memref<32x64xf32, #tpu.memory_space<vmem>>, vector<32x64xf32>
    %cst_34 = arith.constant dense<0.000000e+00> : vector<32x64xf32>
    %178 = tpu.matmul %176, %177, %cst_34 {dimension_numbers = #tpu.dot_dimension_numbers<[1], [0], [0], [1], [0, 0, 1, 1], [], []>} : vector<32x32xf32>, vector<32x64xf32>, vector<32x64xf32> -> vector<32x64xf32>
    %c0_35 = arith.constant 0 : index
    %c0_36 = arith.constant 0 : index
    %179 = vector.load %arg6[%c0_35, %c0_36] : memref<1x64xf32, #tpu.memory_space<vmem>>, vector<1x64xf32>
    %180 = vector.broadcast %179 : vector<1x64xf32> to vector<32x64xf32>
    %181 = arith.addf %178, %180 : vector<32x64xf32>
    %c0_37 = arith.constant 0 : index
    %c0_38 = arith.constant 0 : index
    %182 = vector.load %arg7[%c0_37, %c0_38] : memref<32x64xf32, #tpu.memory_space<vmem>>, vector<32x64xf32>
    tpu.vector_store %arg7[%c0_37, %c0_38], %181 {strides = array<i32>} : memref<32x64xf32, #tpu.memory_space<vmem>>, vector<32x64xf32>,
    return
  }
}

</mosaic_0001>

<llo_original>
// kernel: lstm_basic_forward.1
$region0: #{lstm_basic_forward.1}
  #allocation0 [shape = 'u32[]', space=smem, size = 0x4, offset = 0x4, fixed_abs, tag = 'smem constant byte address 0x4 - core index']
  #allocation1 [shape = 'u32[72,128]{1,0:T(1,128)}', space=vmem, size = 0x9000, scoped, tag = 'internal scratch']
  %s0 = inlined_call_operand.vmem [shape: s32[32,1], index: 0, kind: input, shape index: {}]
  %s1 = inlined_call_operand.vmem [shape: f32[64,32], index: 1, kind: input, shape index: {}]
  %s2 = inlined_call_operand.vmem [shape: f32[32,128], index: 2, kind: input, shape index: {}]
  %s3 = inlined_call_operand.vmem [shape: f32[32,128], index: 3, kind: input, shape index: {}]
  %s4 = inlined_call_operand.vmem [shape: f32[1,128], index: 4, kind: input, shape index: {}]
  %s5 = inlined_call_operand.vmem [shape: f32[32,64], index: 5, kind: input, shape index: {}]
  %s6 = inlined_call_operand.vmem [shape: f32[1,64], index: 6, kind: input, shape index: {}]
  %s7 = inlined_call_operand.hbm [shape: f32[32,64], index: 7, kind: output, shape index: {0}]
  %s8 = inlined_call_operand.hbm [shape: f32[4,32], index: 8, kind: output, shape index: {1}]
  %s9 = inlined_call_operand.hbm [shape: f32[4,32], index: 9, kind: output, shape index: {2}]
  %10 = xla_tuple %s7, %s8, %s9
  %s11 = sld [smem:[#allocation0]]
  $region54: #{lstm_basic_forward.1} parent=0
    _
  %s13 = ssub.s32 1, %s11
  %s14 = scalar_select 0, %s13, %s11
  $region1: #{lstm_basic_forward.1} parent=0
    #allocation2 [shape = 'u8[16384]{0}', space=vmem, size = 0x4000, scoped, tag = 'output window, operand 0, single buffered']
    #allocation3 [shape = 's32[1]{0}', space=sflag, size = 0x4, scoped, tag = 'scoped memory for lstm_basic_forward.1']
    #allocation4 [shape = 'u8[2048]{0}', space=vmem, size = 0x800, scoped, tag = 'output window, operand 1, single buffered']
    #allocation5 [shape = 's32[1]{0}', space=sflag, size = 0x4, scoped, tag = 'scoped memory for lstm_basic_forward.1']
    #allocation6 [shape = 'u8[2048]{0}', space=vmem, size = 0x800, scoped, tag = 'output window, operand 2, single buffered']
    %15 = vsyncpa [#allocation3], 0
    %16 = vsyncpa [#allocation5], 0
    // Predicated region
    $region2: #{lstm_basic_forward.1} parent=1 // pred_check
      _
    $region3: #{lstm_basic_forward.1} parent=1 // pred_check_branch
      %18 = sbr.rel (0) target = $region5
    $region4: #{lstm_basic_forward.1} parent=1 // pred_region
      _
    $region5: #{lstm_basic_forward.1} parent=1 // pred_fallthru
      _
    // Predicated region
    $region6: #{lstm_basic_forward.1} parent=1 // pred_check
      _
    $region7: #{lstm_basic_forward.1} parent=1 // pred_check_branch
      %20 = sbr.rel (0) target = $region9
    $region8: #{lstm_basic_forward.1} parent=1 // pred_region
      _
    $region9: #{lstm_basic_forward.1} parent=1 // pred_fallthru
      _
    // Predicated region
    $region10: #{lstm_basic_forward.1} parent=1 // pred_check
      _
    $region11: #{lstm_basic_forward.1} parent=1 // pred_check_branch
      %22 = sbr.rel (0) target = $region13
    $region12: #{lstm_basic_forward.1} parent=1 // pred_region
      _
    $region13: #{lstm_basic_forward.1} parent=1 // pred_fallthru
      _
    // Predicated region
    $region14: #{lstm_basic_forward.1} parent=1 // pred_check
      _
    $region15: #{lstm_basic_forward.1} parent=1 // pred_check_branch
      %24 = sbr.rel (0) target = $region17
    $region16: #{lstm_basic_forward.1} parent=1 // pred_region
      _
    $region17: #{lstm_basic_forward.1} parent=1 // pred_fallthru
      _
    // Predicated region
    $region18: #{lstm_basic_forward.1} parent=1 // pred_check
      _
    $region19: #{lstm_basic_forward.1} parent=1 // pred_check_branch
      %26 = sbr.rel (0) target = $region21
    $region20: #{lstm_basic_forward.1} parent=1 // pred_region
      _
    $region21: #{lstm_basic_forward.1} parent=1 // pred_fallthru
      _
    // Predicated region
    $region22: #{lstm_basic_forward.1} parent=1 // pred_check
      _
    $region23: #{lstm_basic_forward.1} parent=1 // pred_check_branch
      %28 = sbr.rel (0) target = $region25
    $region24: #{lstm_basic_forward.1} parent=1 // pred_region
      _
    $region25: #{lstm_basic_forward.1} parent=1 // pred_fallthru
      _
    // Predicated region
    $region26: #{lstm_basic_forward.1} parent=1 // pred_check
      _
    $region27: #{lstm_basic_forward.1} parent=1 // pred_check_branch
      %30 = sbr.rel (0) target = $region29
    $region28: #{lstm_basic_forward.1} parent=1 // pred_region
      _
    $region29: #{lstm_basic_forward.1} parent=1 // pred_fallthru
      _
    %v31 = vld [vmem:[%s0] sm:$0xff]
    %v32 = vld [vmem:[%s0 + $0x8] sm:$0xff]
    %v33 = vld [vmem:[%s0 + $0x10] sm:$0xff]
    %v34 = vld [vmem:[%s0 + $0x18] sm:$0xff]
    %v35 = vlaneseq
    %v36 = vand.u32 %v35, 127
    %37 = vset.pattern.permute.xlu0 0
    %38 = vperm.xlu0 %37, %v31
    %v39 = vpop.permute.xlu0 %38
    %40 = vset.pattern.permute.xlu0 0
    %41 = vperm.xlu0 %40, %v32
    %v42 = vpop.permute.xlu0 %41
    %43 = vset.pattern.permute.xlu0 0
    %44 = vperm.xlu0 %43, %v33
    %v45 = vpop.permute.xlu0 %44
    %46 = vset.pattern.permute.xlu0 0
    %47 = vperm.xlu0 %46, %v34
    %v48 = vpop.permute.xlu0 %47
    %vm49 = vcmp.eq.s32.totalorder %v36, %v39
    %vm50 = vcmp.eq.s32.totalorder %v36, %v42
    %vm51 = vcmp.eq.s32.totalorder %v36, %v45
    %vm52 = vcmp.eq.s32.totalorder %v36, %v48
    %v53 = vsel %vm49, 1, 0
    %v54 = vsel %vm50, 1, 0
    %v55 = vsel %vm51, 1, 0
    %v56 = vsel %vm52, 1, 0
    %v57 = vcvt.s32.f32 %v53
    %v58 = vcvt.s32.f32 %v54
    %v59 = vcvt.s32.f32 %v55
    %v60 = vcvt.s32.f32 %v56
    %v61 = vld [vmem:[%s1] sm:$0xff]
    %v62 = vld [vmem:[%s1 + $0x8] sm:$0xff]
    %v63 = vld [vmem:[%s1 + $0x10] sm:$0xff]
    %v64 = vld [vmem:[%s1 + $0x18] sm:$0xff]
    %v65 = vld [vmem:[%s1 + $0x20] sm:$0xff]
    %v66 = vld [vmem:[%s1 + $0x28] sm:$0xff]
    %v67 = vld [vmem:[%s1 + $0x30] sm:$0xff]
    %v68 = vld [vmem:[%s1 + $0x38] sm:$0xff]
    %vm69 = vcmask 523264
    %v71 = vsel %vm69, %v57, 0
    %v74 = vsel %vm69, %v58, 0
    %v77 = vsel %vm69, %v59, 0
    %v80 = vsel %vm69, %v60, 0
    %82 = vmatpush.msra.mxu0 0.0
    %83 = vmatpush.msra.mxu0 0.0
    %84 = vmatpush.msra.mxu0 0.0
    %85 = vmatpush.msra.mxu0 0.0
    %86 = vmatpush.msra.mxu0 0.0
    %87 = vmatpush.msra.mxu0 0.0
    %88 = vmatpush.msra.mxu0 0.0
    %89 = vmatpush.msra.mxu0 0.0
    %90 = vmatpush.msra.mxu0 %v68
    %91 = vmatpush.msra.mxu0 %v67
    %92 = vmatpush.msra.mxu0 %v66
    %93 = vmatpush.msra.mxu0 %v65
    %94 = vmatpush.msra.mxu0 %v64
    %95 = vmatpush.msra.mxu0 %v63
    %96 = vmatpush.msra.mxu0 %v62
    %97 = vmatpush.msra.mxu0 %v61
    %98 = vmatmul.f32.gmra.mxu0 %v71
    %v99 = vpop.f32.mrf.mxu0
    %v100 = vadd.f32 0.0, %v99
    %101 = vmatmul.f32.gmra.mxu0 %v74
    %v102 = vpop.f32.mrf.mxu0
    %v103 = vadd.f32 0.0, %v102
    %104 = vmatmul.f32.gmra.mxu0 %v77
    %v105 = vpop.f32.mrf.mxu0
    %v106 = vadd.f32 0.0, %v105
    %107 = vmatmul.f32.gmra.mxu0 %v80
    %v108 = vpop.f32.mrf.mxu0
    %v109 = vadd.f32 0.0, %v108
    %110 = vdwg.mxu0
    %v111 = vld [vmem:[%s2] sm:$0xff]
    %v112 = vld [vmem:[%s2 + $0x8] sm:$0xff]
    %v113 = vld [vmem:[%s2 + $0x10] sm:$0xff]
    %v114 = vld [vmem:[%s2 + $0x18] sm:$0xff]
    %v115 = vld [vmem:[%s4] sm:$0x1]
    %v117 = vperm.slane %v115, 0
    %vm119 = vcmask 261120
    %v121 = vsel %vm119, %v100, 0
    %v124 = vsel %vm119, %v103, 0
    %v127 = vsel %vm119, %v106, 0
    %v130 = vsel %vm119, %v109, 0
    %132 = vmatpush.msra.mxu0 0.0
    %133 = vmatpush.msra.mxu0 0.0
    %134 = vmatpush.msra.mxu0 0.0
    %135 = vmatpush.msra.mxu0 0.0
    %136 = vmatpush.msra.mxu0 0.0
    %137 = vmatpush.msra.mxu0 0.0
    %138 = vmatpush.msra.mxu0 0.0
    %139 = vmatpush.msra.mxu0 0.0
    %140 = vmatpush.msra.mxu0 0.0
    %141 = vmatpush.msra.mxu0 0.0
    %142 = vmatpush.msra.mxu0 0.0
    %143 = vmatpush.msra.mxu0 0.0
    %144 = vmatpush.msra.mxu0 %v114
    %145 = vmatpush.msra.mxu0 %v113
    %146 = vmatpush.msra.mxu0 %v112
    %147 = vmatpush.msra.mxu0 %v111
    %148 = vmatmul.f32.gmra.mxu0 %v121
    %v149 = vpop.f32.mrf.mxu0
    %v150 = vadd.f32 %v117, %v149
    %151 = vmatmul.f32.gmra.mxu0 %v124
    %v152 = vpop.f32.mrf.mxu0
    %v153 = vadd.f32 %v117, %v152
    %154 = vmatmul.f32.gmra.mxu0 %v127
    %v155 = vpop.f32.mrf.mxu0
    %v156 = vadd.f32 %v117, %v155
    %157 = vmatmul.f32.gmra.mxu0 %v130
    %v158 = vpop.f32.mrf.mxu0
    %v159 = vadd.f32 %v117, %v158
    %160 = vdwg.mxu0
    %v161 = vld [vmem:[%s3] sm:$0xff]
    %v162 = vld [vmem:[%s3 + $0x8] sm:$0xff]
    %v163 = vld [vmem:[%s3 + $0x10] sm:$0xff]
    %v164 = vld [vmem:[%s3 + $0x18] sm:$0xff]
    %vm165 = vcmp.ge.s32.totalorder %v36, 64
    %vm166 = vcmp.lt.s32.totalorder %v36, 96
    %vm167 = vmand %vm165, %vm166
    %v169 = vsel %vm119, 0.0, 0
    %171 = vmatpush.msra.mxu0 0.0
    %172 = vmatpush.msra.mxu0 0.0
    %173 = vmatpush.msra.mxu0 0.0
    %174 = vmatpush.msra.mxu0 0.0
    %175 = vmatpush.msra.mxu0 0.0
    %176 = vmatpush.msra.mxu0 0.0
    %177 = vmatpush.msra.mxu0 0.0
    %178 = vmatpush.msra.mxu0 0.0
    %179 = vmatpush.msra.mxu0 0.0
    %180 = vmatpush.msra.mxu0 0.0
    %181 = vmatpush.msra.mxu0 0.0
    %182 = vmatpush.msra.mxu0 0.0
    %183 = vmatpush.msra.mxu0 %v164
    %184 = vmatpush.msra.mxu0 %v163
    %185 = vmatpush.msra.mxu0 %v162
    %186 = vmatpush.msra.mxu0 %v161
    %187 = vmatmul.f32.gmra.mxu0 %v169
    %v188 = vpop.f32.mrf.mxu0
    %v189 = vadd.f32 0.0, %v188
    %190 = vdwg.mxu0
    %v191 = vadd.f32 %v150, %v189
    %v192 = vtanh.pop %v191
    %v193 = vxor.u32 %v191, 2147483648
    %v194 = vmul.f32 %v193, 1.442695
    %v195 = vpow.pop %v194
    %v196 = vadd.f32 %v195, 1.0
    %v197 = vrcp.pop %v196
    %v198 = vmul.f32 %v196, %v197
    %v199 = vsub.f32 1.0, %v198
    %v200 = vmul.f32 %v197, %v199
    %v201 = vadd.f32 %v197, %v200
    %vm202 = vweird.f32 %v196
    %vm203 = vweird.f32 %v197
    %vm204 = vmor %vm202, %vm203
    %v205 = vsel %vm204, %v197, %v201
    %v206 = vand.u32 2147483647, %v196
    %vm207 = vcmp.eq.f32.partialorder %v206, 8.507059e+37
    %v208 = vand.u32 %v196, 2147483648
    %v209 = vor.u32 1.1754944e-38, %v208
    %v210 = vsel %vm207, %v209, %v205
    %v211 = vmul.f32 1.0, %v210
    %v212 = vsel %vm167, %v192, %v211
    %v213 = vmul.f32 %v212, 0.0
    %215 = vrot.lane.b32.xlu0 %v212, 64
    %v216 = vpop.permute.xlu0 %215
    %v218 = vmul.f32 %v212, %v216
    %220 = vrot.lane.b32.xlu0 %v218, 32
    %v221 = vpop.permute.xlu0 %220
    %v223 = vadd.f32 %v213, %v221
    %v224 = vtanh.pop %v223
    %226 = vrot.lane.b32.xlu0 %v224, 64
    %v227 = vpop.permute.xlu0 %226
    %v229 = vmul.f32 %v212, %v227
    %231 = vrot.lane.b32.xlu0 %v229, 32
    %v232 = vpop.permute.xlu0 %231
    %v233 = vsel %vm119, %v232, 0
    %235 = vmatpush.msra.mxu0 0.0
    %236 = vmatpush.msra.mxu0 0.0
    %237 = vmatpush.msra.mxu0 0.0
    %238 = vmatpush.msra.mxu0 0.0
    %239 = vmatpush.msra.mxu0 0.0
    %240 = vmatpush.msra.mxu0 0.0
    %241 = vmatpush.msra.mxu0 0.0
    %242 = vmatpush.msra.mxu0 0.0
    %243 = vmatpush.msra.mxu0 0.0
    %244 = vmatpush.msra.mxu0 0.0
    %245 = vmatpush.msra.mxu0 0.0
    %246 = vmatpush.msra.mxu0 0.0
    %247 = vmatpush.msra.mxu0 %v164
    %248 = vmatpush.msra.mxu0 %v163
    %249 = vmatpush.msra.mxu0 %v162
    %250 = vmatpush.msra.mxu0 %v161
    %251 = vmatmul.f32.gmra.mxu0 %v233
    %v252 = vpop.f32.mrf.mxu0
    %v253 = vadd.f32 0.0, %v252
    %254 = vdwg.mxu0
    %v256 = vrot.slane %v253, 4
    %v258 = vadd.f32 %v150, %v256
    %v259 = vtanh.pop %v258
    %v260 = vxor.u32 %v258, 2147483648
    %v261 = vmul.f32 %v260, 1.442695
    %v262 = vpow.pop %v261
    %v263 = vadd.f32 %v262, 1.0
    %v264 = vrcp.pop %v263
    %v265 = vmul.f32 %v263, %v264
    %v266 = vsub.f32 1.0, %v265
    %v267 = vmul.f32 %v264, %v266
    %v268 = vadd.f32 %v264, %v267
    %vm269 = vweird.f32 %v263
    %vm270 = vweird.f32 %v264
    %vm271 = vmor %vm269, %vm270
    %v272 = vsel %vm271, %v264, %v268
    %v273 = vand.u32 2147483647, %v263
    %vm274 = vcmp.eq.f32.partialorder %v273, 8.507059e+37
    %v275 = vand.u32 %v263, 2147483648
    %v276 = vor.u32 1.1754944e-38, %v275
    %v277 = vsel %vm274, %v276, %v272
    %v278 = vmul.f32 1.0, %v277
    %v279 = vsel %vm167, %v259, %v278
    %v281 = vrot.slane %v223, 4
    %v283 = vmul.f32 %v279, %v281
    %285 = vrot.lane.b32.xlu0 %v279, 64
    %v286 = vpop.permute.xlu0 %285
    %v288 = vmul.f32 %v279, %v286
    %290 = vrot.lane.b32.xlu0 %v288, 32
    %v291 = vpop.permute.xlu0 %290
    %v293 = vadd.f32 %v283, %v291
    %v294 = vtanh.pop %v293
    %296 = vrot.lane.b32.xlu0 %v294, 64
    %v297 = vpop.permute.xlu0 %296
    %v299 = vmul.f32 %v279, %v297
    %v301 = vrot.slane %v299, 4
    %302 = vrot.lane.b32.xlu0 %v301, 32
    %v303 = vpop.permute.xlu0 %302
    %v304 = vsel %vm119, %v303, 0
    %306 = vmatpush.msra.mxu0 0.0
    %307 = vmatpush.msra.mxu0 0.0
    %308 = vmatpush.msra.mxu0 0.0
    %309 = vmatpush.msra.mxu0 0.0
    %310 = vmatpush.msra.mxu0 0.0
    %311 = vmatpush.msra.mxu0 0.0
    %312 = vmatpush.msra.mxu0 0.0
    %313 = vmatpush.msra.mxu0 0.0
    %314 = vmatpush.msra.mxu0 0.0
    %315 = vmatpush.msra.mxu0 0.0
    %316 = vmatpush.msra.mxu0 0.0
    %317 = vmatpush.msra.mxu0 0.0
    %318 = vmatpush.msra.mxu0 %v164
    %319 = vmatpush.msra.mxu0 %v163
    %320 = vmatpush.msra.mxu0 %v162
    %321 = vmatpush.msra.mxu0 %v161
    %322 = vmatmul.f32.gmra.mxu0 %v304
    %v323 = vpop.f32.mrf.mxu0
    %v324 = vadd.f32 0.0, %v323
    %325 = vdwg.mxu0
    %v326 = vadd.f32 %v153, %v324
    %v327 = vtanh.pop %v326
    %v328 = vxor.u32 %v326, 2147483648
    %v329 = vmul.f32 %v328, 1.442695
    %v330 = vpow.pop %v329
    %v331 = vadd.f32 %v330, 1.0
    %v332 = vrcp.pop %v331
    %v333 = vmul.f32 %v331, %v332
    %v334 = vsub.f32 1.0, %v333
    %v335 = vmul.f32 %v332, %v334
    %v336 = vadd.f32 %v332, %v335
    %vm337 = vweird.f32 %v331
    %vm338 = vweird.f32 %v332
    %vm339 = vmor %vm337, %vm338
    %v340 = vsel %vm339, %v332, %v336
    %v341 = vand.u32 2147483647, %v331
    %vm342 = vcmp.eq.f32.partialorder %v341, 8.507059e+37
    %v343 = vand.u32 %v331, 2147483648
    %v344 = vor.u32 1.1754944e-38, %v343
    %v345 = vsel %vm342, %v344, %v340
    %v346 = vmul.f32 1.0, %v345
    %v347 = vsel %vm167, %v327, %v346
    %v349 = vrot.slane %v293, 4
    %v351 = vmul.f32 %v347, %v349
    %353 = vrot.lane.b32.xlu0 %v347, 64
    %v354 = vpop.permute.xlu0 %353
    %v356 = vmul.f32 %v347, %v354
    %358 = vrot.lane.b32.xlu0 %v356, 32
    %v359 = vpop.permute.xlu0 %358
    %v361 = vadd.f32 %v351, %v359
    %v362 = vtanh.pop %v361
    %364 = vrot.lane.b32.xlu0 %v362, 64
    %v365 = vpop.permute.xlu0 %364
    %v367 = vmul.f32 %v347, %v365
    %369 = vrot.lane.b32.xlu0 %v367, 32
    %v370 = vpop.permute.xlu0 %369
    %v371 = vsel %vm119, %v370, 0
    %373 = vmatpush.msra.mxu0 0.0
    %374 = vmatpush.msra.mxu0 0.0
    %375 = vmatpush.msra.mxu0 0.0
    %376 = vmatpush.msra.mxu0 0.0
    %377 = vmatpush.msra.mxu0 0.0
    %378 = vmatpush.msra.mxu0 0.0
    %379 = vmatpush.msra.mxu0 0.0
    %380 = vmatpush.msra.mxu0 0.0
    %381 = vmatpush.msra.mxu0 0.0
    %382 = vmatpush.msra.mxu0 0.0
    %383 = vmatpush.msra.mxu0 0.0
    %384 = vmatpush.msra.mxu0 0.0
    %385 = vmatpush.msra.mxu0 %v164
    %386 = vmatpush.msra.mxu0 %v163
    %387 = vmatpush.msra.mxu0 %v162
    %388 = vmatpush.msra.mxu0 %v161
    %389 = vmatmul.f32.gmra.mxu0 %v371
    %v390 = vpop.f32.mrf.mxu0
    %v391 = vadd.f32 0.0, %v390
    %392 = vdwg.mxu0
    %v394 = vrot.slane %v391, 4
    %v396 = vadd.f32 %v153, %v394
    %v397 = vtanh.pop %v396
    %v398 = vxor.u32 %v396, 2147483648
    %v399 = vmul.f32 %v398, 1.442695
    %v400 = vpow.pop %v399
    %v401 = vadd.f32 %v400, 1.0
    %v402 = vrcp.pop %v401
    %v403 = vmul.f32 %v401, %v402
    %v404 = vsub.f32 1.0, %v403
    %v405 = vmul.f32 %v402, %v404
    %v406 = vadd.f32 %v402, %v405
    %vm407 = vweird.f32 %v401
    %vm408 = vweird.f32 %v402
    %vm409 = vmor %vm407, %vm408
    %v410 = vsel %vm409, %v402, %v406
    %v411 = vand.u32 2147483647, %v401
    %vm412 = vcmp.eq.f32.partialorder %v411, 8.507059e+37
    %v413 = vand.u32 %v401, 2147483648
    %v414 = vor.u32 1.1754944e-38, %v413
    %v415 = vsel %vm412, %v414, %v410
    %v416 = vmul.f32 1.0, %v415
    %v417 = vsel %vm167, %v397, %v416
    %v419 = vrot.slane %v361, 4
    %v421 = vmul.f32 %v417, %v419
    %423 = vrot.lane.b32.xlu0 %v417, 64
    %v424 = vpop.permute.xlu0 %423
    %v426 = vmul.f32 %v417, %v424
    %428 = vrot.lane.b32.xlu0 %v426, 32
    %v429 = vpop.permute.xlu0 %428
    %v431 = vadd.f32 %v421, %v429
    %v432 = vtanh.pop %v431
    %434 = vrot.lane.b32.xlu0 %v432, 64
    %v435 = vpop.permute.xlu0 %434
    %v437 = vmul.f32 %v417, %v435
    %v439 = vrot.slane %v437, 4
    %440 = vrot.lane.b32.xlu0 %v439, 32
    %v441 = vpop.permute.xlu0 %440
    %v442 = vsel %vm119, %v441, 0
    %444 = vmatpush.msra.mxu0 0.0
    %445 = vmatpush.msra.mxu0 0.0
    %446 = vmatpush.msra.mxu0 0.0
    %447 = vmatpush.msra.mxu0 0.0
    %448 = vmatpush.msra.mxu0 0.0
    %449 = vmatpush.msra.mxu0 0.0
    %450 = vmatpush.msra.mxu0 0.0
    %451 = vmatpush.msra.mxu0 0.0
    %452 = vmatpush.msra.mxu0 0.0
    %453 = vmatpush.msra.mxu0 0.0
    %454 = vmatpush.msra.mxu0 0.0
    %455 = vmatpush.msra.mxu0 0.0
    %456 = vmatpush.msra.mxu0 %v164
    %457 = vmatpush.msra.mxu0 %v163
    %458 = vmatpush.msra.mxu0 %v162
    %459 = vmatpush.msra.mxu0 %v161
    %460 = vmatmul.f32.gmra.mxu0 %v442
    %v461 = vpop.f32.mrf.mxu0
    %v462 = vadd.f32 0.0, %v461
    %463 = vdwg.mxu0
    %v464 = vadd.f32 %v156, %v462
    %v465 = vtanh.pop %v464
    %v466 = vxor.u32 %v464, 2147483648
    %v467 = vmul.f32 %v466, 1.442695
    %v468 = vpow.pop %v467
    %v469 = vadd.f32 %v468, 1.0
    %v470 = vrcp.pop %v469
    %v471 = vmul.f32 %v469, %v470
    %v472 = vsub.f32 1.0, %v471
    %v473 = vmul.f32 %v470, %v472
    %v474 = vadd.f32 %v470, %v473
    %vm475 = vweird.f32 %v469
    %vm476 = vweird.f32 %v470
    %vm477 = vmor %vm475, %vm476
    %v478 = vsel %vm477, %v470, %v474
    %v479 = vand.u32 2147483647, %v469
    %vm480 = vcmp.eq.f32.partialorder %v479, 8.507059e+37
    %v481 = vand.u32 %v469, 2147483648
    %v482 = vor.u32 1.1754944e-38, %v481
    %v483 = vsel %vm480, %v482, %v478
    %v484 = vmul.f32 1.0, %v483
    %v485 = vsel %vm167, %v465, %v484
    %v487 = vrot.slane %v431, 4
    %v489 = vmul.f32 %v485, %v487
    %491 = vrot.lane.b32.xlu0 %v485, 64
    %v492 = vpop.permute.xlu0 %491
    %v494 = vmul.f32 %v485, %v492
    %496 = vrot.lane.b32.xlu0 %v494, 32
    %v497 = vpop.permute.xlu0 %496
    %v499 = vadd.f32 %v489, %v497
    %v500 = vtanh.pop %v499
    %502 = vrot.lane.b32.xlu0 %v500, 64
    %v503 = vpop.permute.xlu0 %502
    %v505 = vmul.f32 %v485, %v503
    %507 = vrot.lane.b32.xlu0 %v505, 32
    %v508 = vpop.permute.xlu0 %507
    %v509 = vsel %vm119, %v508, 0
    %511 = vmatpush.msra.mxu0 0.0
    %512 = vmatpush.msra.mxu0 0.0
    %513 = vmatpush.msra.mxu0 0.0
    %514 = vmatpush.msra.mxu0 0.0
    %515 = vmatpush.msra.mxu0 0.0
    %516 = vmatpush.msra.mxu0 0.0
    %517 = vmatpush.msra.mxu0 0.0
    %518 = vmatpush.msra.mxu0 0.0
    %519 = vmatpush.msra.mxu0 0.0
    %520 = vmatpush.msra.mxu0 0.0
    %521 = vmatpush.msra.mxu0 0.0
    %522 = vmatpush.msra.mxu0 0.0
    %523 = vmatpush.msra.mxu0 %v164
    %524 = vmatpush.msra.mxu0 %v163
    %525 = vmatpush.msra.mxu0 %v162
    %526 = vmatpush.msra.mxu0 %v161
    %527 = vmatmul.f32.gmra.mxu0 %v509
    %v528 = vpop.f32.mrf.mxu0
    %v529 = vadd.f32 0.0, %v528
    %530 = vdwg.mxu0
    %v532 = vrot.slane %v529, 4
    %v534 = vadd.f32 %v156, %v532
    %v535 = vtanh.pop %v534
    %v536 = vxor.u32 %v534, 2147483648
    %v537 = vmul.f32 %v536, 1.442695
    %v538 = vpow.pop %v537
    %v539 = vadd.f32 %v538, 1.0
    %v540 = vrcp.pop %v539
    %v541 = vmul.f32 %v539, %v540
    %v542 = vsub.f32 1.0, %v541
    %v543 = vmul.f32 %v540, %v542
    %v544 = vadd.f32 %v540, %v543
    %vm545 = vweird.f32 %v539
    %vm546 = vweird.f32 %v540
    %vm547 = vmor %vm545, %vm546
    %v548 = vsel %vm547, %v540, %v544
    %v549 = vand.u32 2147483647, %v539
    %vm550 = vcmp.eq.f32.partialorder %v549, 8.507059e+37
    %v551 = vand.u32 %v539, 2147483648
    %v552 = vor.u32 1.1754944e-38, %v551
    %v553 = vsel %vm550, %v552, %v548
    %v554 = vmul.f32 1.0, %v553
    %v555 = vsel %vm167, %v535, %v554
    %v557 = vrot.slane %v499, 4
    %v559 = vmul.f32 %v555, %v557
    %561 = vrot.lane.b32.xlu0 %v555, 64
    %v562 = vpop.permute.xlu0 %561
    %v564 = vmul.f32 %v555, %v562
    %566 = vrot.lane.b32.xlu0 %v564, 32
    %v567 = vpop.permute.xlu0 %566
    %v569 = vadd.f32 %v559, %v567
    %v570 = vtanh.pop %v569
    %572 = vrot.lane.b32.xlu0 %v570, 64
    %v573 = vpop.permute.xlu0 %572
    %v575 = vmul.f32 %v555, %v573
    %v577 = vrot.slane %v575, 4
    %578 = vrot.lane.b32.xlu0 %v577, 32
    %v579 = vpop.permute.xlu0 %578
    %v580 = vsel %vm119, %v579, 0
    %582 = vmatpush.msra.mxu0 0.0
    %583 = vmatpush.msra.mxu0 0.0
    %584 = vmatpush.msra.mxu0 0.0
    %585 = vmatpush.msra.mxu0 0.0
    %586 = vmatpush.msra.mxu0 0.0
    %587 = vmatpush.msra.mxu0 0.0
    %588 = vmatpush.msra.mxu0 0.0
    %589 = vmatpush.msra.mxu0 0.0
    %590 = vmatpush.msra.mxu0 0.0
    %591 = vmatpush.msra.mxu0 0.0
    %592 = vmatpush.msra.mxu0 0.0
    %593 = vmatpush.msra.mxu0 0.0
    %594 = vmatpush.msra.mxu0 %v164
    %595 = vmatpush.msra.mxu0 %v163
    %596 = vmatpush.msra.mxu0 %v162
    %597 = vmatpush.msra.mxu0 %v161
    %598 = vmatmul.f32.gmra.mxu0 %v580
    %v599 = vpop.f32.mrf.mxu0
    %v600 = vadd.f32 0.0, %v599
    %601 = vdwg.mxu0
    %v602 = vadd.f32 %v159, %v600
    %v603 = vtanh.pop %v602
    %v604 = vxor.u32 %v602, 2147483648
    %v605 = vmul.f32 %v604, 1.442695
    %v606 = vpow.pop %v605
    %v607 = vadd.f32 %v606, 1.0
    %v608 = vrcp.pop %v607
    %v609 = vmul.f32 %v607, %v608
    %v610 = vsub.f32 1.0, %v609
    %v611 = vmul.f32 %v608, %v610
    %v612 = vadd.f32 %v608, %v611
    %vm613 = vweird.f32 %v607
    %vm614 = vweird.f32 %v608
    %vm615 = vmor %vm613, %vm614
    %v616 = vsel %vm615, %v608, %v612
    %v617 = vand.u32 2147483647, %v607
    %vm618 = vcmp.eq.f32.partialorder %v617, 8.507059e+37
    %v619 = vand.u32 %v607, 2147483648
    %v620 = vor.u32 1.1754944e-38, %v619
    %v621 = vsel %vm618, %v620, %v616
    %v622 = vmul.f32 1.0, %v621
    %v623 = vsel %vm167, %v603, %v622
    %v625 = vrot.slane %v569, 4
    %v627 = vmul.f32 %v623, %v625
    %629 = vrot.lane.b32.xlu0 %v623, 64
    %v630 = vpop.permute.xlu0 %629
    %v632 = vmul.f32 %v623, %v630
    %634 = vrot.lane.b32.xlu0 %v632, 32
    %v635 = vpop.permute.xlu0 %634
    %v637 = vadd.f32 %v627, %v635
    %v638 = vtanh.pop %v637
    %640 = vrot.lane.b32.xlu0 %v638, 64
    %v641 = vpop.permute.xlu0 %640
    %v643 = vmul.f32 %v623, %v641
    %645 = vrot.lane.b32.xlu0 %v643, 32
    %v646 = vpop.permute.xlu0 %645
    %v647 = vsel %vm119, %v646, 0
    %649 = vmatpush.msra.mxu0 0.0
    %650 = vmatpush.msra.mxu0 0.0
    %651 = vmatpush.msra.mxu0 0.0
    %652 = vmatpush.msra.mxu0 0.0
    %653 = vmatpush.msra.mxu0 0.0
    %654 = vmatpush.msra.mxu0 0.0
    %655 = vmatpush.msra.mxu0 0.0
    %656 = vmatpush.msra.mxu0 0.0
    %657 = vmatpush.msra.mxu0 0.0
    %658 = vmatpush.msra.mxu0 0.0
    %659 = vmatpush.msra.mxu0 0.0
    %660 = vmatpush.msra.mxu0 0.0
    %661 = vmatpush.msra.mxu0 %v164
    %662 = vmatpush.msra.mxu0 %v163
    %663 = vmatpush.msra.mxu0 %v162
    %664 = vmatpush.msra.mxu0 %v161
    %665 = vmatmul.f32.gmra.mxu0 %v647
    %v666 = vpop.f32.mrf.mxu0
    %v667 = vadd.f32 0.0, %v666
    %668 = vdwg.mxu0
    %v670 = vrot.slane %v667, 4
    %v672 = vadd.f32 %v159, %v670
    %v673 = vtanh.pop %v672
    %v674 = vxor.u32 %v672, 2147483648
    %v675 = vmul.f32 %v674, 1.442695
    %v676 = vpow.pop %v675
    %v677 = vadd.f32 %v676, 1.0
    %v678 = vrcp.pop %v677
    %v679 = vmul.f32 %v677, %v678
    %v680 = vsub.f32 1.0, %v679
    %v681 = vmul.f32 %v678, %v680
    %v682 = vadd.f32 %v678, %v681
    %vm683 = vweird.f32 %v677
    %vm684 = vweird.f32 %v678
    %vm685 = vmor %vm683, %vm684
    %v686 = vsel %vm685, %v678, %v682
    %v687 = vand.u32 2147483647, %v677
    %vm688 = vcmp.eq.f32.partialorder %v687, 8.507059e+37
    %v689 = vand.u32 %v677, 2147483648
    %v690 = vor.u32 1.1754944e-38, %v689
    %v691 = vsel %vm688, %v690, %v686
    %v692 = vmul.f32 1.0, %v691
    %v693 = vsel %vm167, %v673, %v692
    %v695 = vrot.slane %v637, 4
    %v697 = vmul.f32 %v693, %v695
    %699 = vrot.lane.b32.xlu0 %v693, 64
    %v700 = vpop.permute.xlu0 %699
    %v702 = vmul.f32 %v693, %v700
    %704 = vrot.lane.b32.xlu0 %v702, 32
    %v705 = vpop.permute.xlu0 %704
    %v707 = vadd.f32 %v697, %v705
    %v708 = vtanh.pop %v707
    %710 = vrot.lane.b32.xlu0 %v708, 64
    %v711 = vpop.permute.xlu0 %710
    %v713 = vmul.f32 %v693, %v711
    %715 = vrot.lane.b32.xlu0 %v713, 32
    %v716 = vpop.permute.xlu0 %715
    %vm718 = vcmask 261124
    %719 = vst.msk [vmem:[#allocation4 - $0x4] sm:$0xf0] %vm718, %v716
    %721 = vrot.lane.b32.xlu0 %v707, 96
    %v722 = vpop.permute.xlu0 %721
    %724 = vst.msk [vmem:[#allocation6 - $0x4] sm:$0xf0] %vm718, %v722
    %vm725 = vcmask 1043456
    %v726 = vsel %vm725, %v229, %v299
    %v727 = vsel %vm725, %v367, %v437
    %v728 = vsel %vm725, %v505, %v575
    %v729 = vsel %vm725, %v643, %v713
    %v730 = vld [vmem:[%s5] sm:$0xff]
    %v731 = vld [vmem:[%s5 + $0x8] sm:$0xff]
    %v732 = vld [vmem:[%s5 + $0x10] sm:$0xff]
    %v733 = vld [vmem:[%s5 + $0x18] sm:$0xff]
    %v734 = vld [vmem:[%s6] sm:$0x1]
    %v736 = vperm.slane %v734, 0
    %742 = vrot.lane.b32.xlu0 %v726, 32
    %v743 = vpop.permute.xlu0 %742
    %744 = vrot.lane.b32.xlu0 %v727, 32
    %v745 = vpop.permute.xlu0 %744
    %746 = vrot.lane.b32.xlu0 %v728, 32
    %v747 = vpop.permute.xlu0 %746
    %748 = vrot.lane.b32.xlu0 %v729, 32
    %v749 = vpop.permute.xlu0 %748
    %v750 = vsel %vm119, %v743, 0
    %v752 = vsel %vm119, %v745, 0
    %v754 = vsel %vm119, %v747, 0
    %v756 = vsel %vm119, %v749, 0
    %758 = vmatpush.msra.mxu0 0.0
    %759 = vmatpush.msra.mxu0 0.0
    %760 = vmatpush.msra.mxu0 0.0
    %761 = vmatpush.msra.mxu0 0.0
    %762 = vmatpush.msra.mxu0 0.0
    %763 = vmatpush.msra.mxu0 0.0
    %764 = vmatpush.msra.mxu0 0.0
    %765 = vmatpush.msra.mxu0 0.0
    %766 = vmatpush.msra.mxu0 0.0
    %767 = vmatpush.msra.mxu0 0.0
    %768 = vmatpush.msra.mxu0 0.0
    %769 = vmatpush.msra.mxu0 0.0
    %770 = vmatpush.msra.mxu0 %v733
    %771 = vmatpush.msra.mxu0 %v732
    %772 = vmatpush.msra.mxu0 %v731
    %773 = vmatpush.msra.mxu0 %v730
    %774 = vmatmul.f32.gmra.mxu0 %v750
    %v775 = vpop.f32.mrf.mxu0
    %v776 = vadd.f32 %v736, %v775
    %777 = vmatmul.f32.gmra.mxu0 %v752
    %v778 = vpop.f32.mrf.mxu0
    %v779 = vadd.f32 %v736, %v778
    %780 = vmatmul.f32.gmra.mxu0 %v754
    %v781 = vpop.f32.mrf.mxu0
    %v782 = vadd.f32 %v736, %v781
    %783 = vmatmul.f32.gmra.mxu0 %v756
    %v784 = vpop.f32.mrf.mxu0
    %v785 = vadd.f32 %v736, %v784
    %786 = vdwg.mxu0
    %787 = vst.msk [vmem:[#allocation2] sm:$0xff] %vm69, %v776
    %788 = vst.msk [vmem:[#allocation2 + $0x8] sm:$0xff] %vm69, %v779
    %789 = vst.msk [vmem:[#allocation2 + $0x10] sm:$0xff] %vm69, %v782
    %790 = vst.msk [vmem:[#allocation2 + $0x18] sm:$0xff] %vm69, %v785
    // Predicated region
    $region30: #{lstm_basic_forward.1} parent=1 // pred_check
      _
    $region31: #{lstm_basic_forward.1} parent=1 // pred_check_branch
      %792 = sbr.rel (0) target = $region33
    $region32: #{lstm_basic_forward.1} parent=1 // pred_region
      %794 = vsyncadd [#allocation3], 0
      %s795 = sshll.u32 [#allocation2], 4
      %s796 = int_to_ptr.vmem [resolvable:$true] %s795
      %s797 = sshll.u32 %s7, 4
      %s798 = int_to_ptr.hbm [resolvable:$true] %s797
      %803 = dma.vmem_to_hbm [thread:$0]  %s796, 512, %s798, [#allocation3], 128, 128, 8
    $region33: #{lstm_basic_forward.1} parent=1 // pred_fallthru
      _
    // Predicated region
    $region34: #{lstm_basic_forward.1} parent=1 // pred_check
      _
    $region35: #{lstm_basic_forward.1} parent=1 // pred_check_branch
      %805 = sbr.rel (0) target = $region37
    $region36: #{lstm_basic_forward.1} parent=1 // pred_region
      %807 = vsyncadd [#allocation5], 0
      %s809 = sshll.u32 [#allocation4], 4
      %s810 = int_to_ptr.vmem [resolvable:$true] %s809
      %s811 = sshll.u32 %s8, 4
      %s812 = int_to_ptr.hbm [resolvable:$true] %s811
      %814 = dma.vmem_to_hbm [thread:$0]  %s810, 64, %s812, [#allocation5]
    $region37: #{lstm_basic_forward.1} parent=1 // pred_fallthru
      _
    // Predicated region
    $region38: #{lstm_basic_forward.1} parent=1 // pred_check
      _
    $region39: #{lstm_basic_forward.1} parent=1 // pred_check_branch
      %816 = sbr.rel (0) target = $region41
    $region40: #{lstm_basic_forward.1} parent=1 // pred_region
      %818 = vsyncadd [#allocation5], 0
      %s820 = sshll.u32 [#allocation6], 4
      %s821 = int_to_ptr.vmem [resolvable:$true] %s820
      %s822 = sshll.u32 %s9, 4
      %s823 = int_to_ptr.hbm [resolvable:$true] %s822
      %825 = dma.vmem_to_hbm [thread:$0]  %s821, 64, %s823, [#allocation5]
    $region41: #{lstm_basic_forward.1} parent=1 // pred_fallthru
      _
    // Predicated region
    $region42: #{lstm_basic_forward.1} parent=1 // pred_check
      _
    $region43: #{lstm_basic_forward.1} parent=1 // pred_check_branch
      %827 = sbr.rel (0) target = $region45
    $region44: #{lstm_basic_forward.1} parent=1 // pred_region
      %829 = dma.done [#allocation3], 512
    $region45: #{lstm_basic_forward.1} parent=1 // pred_fallthru
      _
    // Predicated region
    $region46: #{lstm_basic_forward.1} parent=1 // pred_check
      _
    $region47: #{lstm_basic_forward.1} parent=1 // pred_check_branch
      %831 = sbr.rel (0) target = $region49
    $region48: #{lstm_basic_forward.1} parent=1 // pred_region
      %833 = dma.done [#allocation5], 64
    $region49: #{lstm_basic_forward.1} parent=1 // pred_fallthru
      _
    // Predicated region
    $region50: #{lstm_basic_forward.1} parent=1 // pred_check
      _
    $region51: #{lstm_basic_forward.1} parent=1 // pred_check_branch
      %835 = sbr.rel (0) target = $region53
    $region52: #{lstm_basic_forward.1} parent=1 // pred_region
      %837 = dma.done [#allocation5], 64
    $region53: #{lstm_basic_forward.1} parent=1 // pred_fallthru
      _
    %838 = vsyncpa [#allocation3], 1
    %839 = vsyncpa [#allocation5], 1

</llo_original>
